<compile_context>
chip_gen: v6e
topology: v6e:2x2x1
jax: 0.10.0
libtpu: 0.0.40
codegen_flags: <defaults>
</compile_context>

<pallas_src>
import functools

import jax
import jax.numpy as jnp
from jax.experimental import pallas as pl
from jax.experimental.pallas import tpu as pltpu


def _round_up(x, m):
    return (x + m - 1) // m * m


# ----------------------------------------------------------------------------
# One-time parameter preparation (offline, outside the per-call jit)
# ----------------------------------------------------------------------------

def fold_reward_head(w_lm, w_head, *, chunk=16384):
    """One-time fold of the two constant linears: W_lm [H,V] bf16 @ w_head [V]
    -> w_fold [H] f32.  Chunked over V so no full-size f32 copy of W_lm is
    ever materialized (W_lm f32 would be ~2.2 GiB at real Qwen shapes)."""
    H, V = w_lm.shape
    acc = jnp.zeros((H,), jnp.float32)
    for start in range(0, V, chunk):
        stop = min(start + chunk, V)
        acc = acc + jnp.dot(
            w_lm[:, start:stop].astype(jnp.float32),
            w_head[start:stop].astype(jnp.float32),
            preferred_element_type=jnp.float32,
        )
    return acc


def prepare_fused_head_weights(w_lm, w_head, *, tv, num_core_splits=1):
    """One-time zero-pad of the vocab axis so the fused kernel never pads the
    ~1 GiB W_lm per call.  Padding columns are zero in BOTH W_lm and w_head,
    so they contribute nothing to the reduction."""
    H, V = w_lm.shape
    Vp = _round_up(V, tv * num_core_splits)
    if Vp != V:
        w_lm = jnp.pad(w_lm, ((0, 0), (0, Vp - V)))
        w_head = jnp.pad(w_head, (0, Vp - V))
    w_head_row = w_head.reshape(1, Vp).astype(jnp.float32)
    return w_lm, w_head_row


def pick_fused_config(H, V, wlm_itemsize=2):
    """Generation-gated (tv, wlm_buffers, vmem_limit_bytes).

    128 MiB VMEM parts (v5e/v6e): tv=4096 (W_lm tile ~28 MiB), limit ~68 MiB.
    64 MiB VMEM parts (v7x):      tv=2048 (tile ~14 MiB),      limit <=48 MiB.
    """
    vmem_cap = 64 << 20  # conservative fallback (v7x-sized)
    try:
        info = pltpu.get_tpu_info()
        vmem_cap = int(getattr(info, "vmem_capacity_bytes", vmem_cap))
    except Exception:
        pass
    allowed = max(32 << 20, (vmem_cap * 3) // 4)
    headroom = 12 << 20

    tv = 4096 if vmem_cap >= (96 << 20) else 2048
    tv = min(tv, _round_up(V, 128))
    # Shrink until a double-buffered W_lm tile (+ headroom) fits the budget.
    while tv > 128 and 2 * H * tv * wlm_itemsize + headroom > allowed:
        tv = max(128, (tv // 2 // 128) * 128)

    tile = H * tv * wlm_itemsize
    wlm_buffers = 3 if 3 * tile + (16 << 20) <= allowed else 2
    vmem_limit = min(allowed, max(32 << 20, wlm_buffers * tile + headroom))
    return tv, wlm_buffers, vmem_limit


# ----------------------------------------------------------------------------
# Primary path: offline-folded reward head  sigmoid(h_last @ w_fold + b)
# ----------------------------------------------------------------------------
# TODO(synk): this micro-GEMV is launch-latency bound; in production it could
# be fused into the backbone's final layer (or left to XLA).  Kept as a
# Pallas kernel here.

def _folded_head_kernel(bias_ref, h_ref, wfold_ref, out_ref):
    # [B, H] (bf16 -> f32) dotted against the [1, H] folded row on the
    # VPU (mul) + XLU (lane sum); avoids an N=1 MXU matmul whose [H,1]
    # operand would lane-pad to [H,128].
    h = h_ref[...].astype(jnp.float32)            # [B, H]
    logits = jnp.sum(h * wfold_ref[...], axis=-1, keepdims=True)  # [B, 1]
    out_ref[...] = jax.nn.sigmoid(logits + bias_ref[0])


def qwen_math_rm_head_folded(h_last, w_fold_row, b_head):
    """h_last [B,H] bf16, w_fold_row [1,H] f32, b_head [] f32 -> [B] f32."""
    B, H = h_last.shape
    bias1d = jnp.reshape(b_head, (1,)).astype(jnp.float32)

    cost = pl.CostEstimate(
        flops=2 * B * H + 4 * B,
        transcendentals=B,
        bytes_accessed=B * H * h_last.dtype.itemsize + H * 4 + B * 4,
    )

    out = pl.pallas_call(
        _folded_head_kernel,
        out_shape=jax.ShapeDtypeStruct((B, 1), jnp.float32),
        grid_spec=pltpu.PrefetchScalarGridSpec(
            num_scalar_prefetch=0,
            grid=(1,),
            in_specs=[
                pl.BlockSpec(memory_space=pltpu.SMEM),          # bias (1,)
                pl.BlockSpec((B, H), lambda i: (0, 0)),         # h_last
                pl.BlockSpec((1, H), lambda i: (0, 0)),         # w_fold row
            ],
            out_specs=pl.BlockSpec((B, 1), lambda i: (0, 0)),
        ),
        compiler_params=pltpu.CompilerParams(
            dimension_semantics=("arbitrary",),
        ),
        cost_estimate=cost,
    )(bias1d, h_last, w_fold_row)
    return out[:, 0]  # squeeze(dim=1)


# ----------------------------------------------------------------------------
# Fallback path: fused lm-head stream + Linear(V,1) + sigmoid
# ----------------------------------------------------------------------------

def _fused_head_kernel(h_ref, wlm_ref, whead_ref, out_ref):
    """Grid = (core_split, vocab tiles).  Vocab axis (last) is the reduction;
    partial sums accumulate directly into the resident [B,1] output block."""
    k = pl.program_id(1)

    @pl.when(k == 0)
    def _():
        out_ref[...] = jnp.zeros_like(out_ref)

    # Last-token logits tile in f32 (MXU).
    logits_tile = jnp.dot(
        h_ref[...], wlm_ref[...], preferred_element_type=jnp.float32
    )  # [B, tv] f32

    # Reduce against w_head on VPU (mul) + XLU (lane sum) -- free slots on an
    # HBM-bound kernel, and no per-step transpose of the (1, tv) row.
    out_ref[...] += jnp.sum(
        logits_tile * whead_ref[...], axis=-1, keepdims=True
    )  # [B, 1]


def qwen_math_rm_head_fused(h_last, w_lm_padded, w_head_row, b_head, *,
                            tv, num_core_splits=1, wlm_buffers=2,
                            vmem_limit_bytes=None):
    """h_last [B,H] bf16, w_lm_padded [H,Vp] bf16, w_head_row [1,Vp] f32,
    b_head [] f32 -> [B] f32.  Weights must be pre-padded with
    prepare_fused_head_weights (Vp % (tv * num_core_splits) == 0)."""
    B, H = h_last.shape
    _, Vp = w_lm_padded.shape
    C = int(num_core_splits)
    assert Vp % (tv * C) == 0, "pre-pad weights with prepare_fused_head_weights"
    kt = Vp // (tv * C)  # vocab tiles per core split

    wlm_index_map = lambda c, k: (0, c * kt + k)
    if wlm_buffers != 2:
        wlm_spec = pl.BlockSpec((H, tv), wlm_index_map,
                                pipeline_mode=pl.Buffered(int(wlm_buffers)))
    else:
        wlm_spec = pl.BlockSpec((H, tv), wlm_index_map)

    cost = pl.CostEstimate(
        flops=2 * B * H * Vp + 2 * B * Vp,
        transcendentals=0,
        bytes_accessed=(
            H * Vp * w_lm_padded.dtype.itemsize
            + Vp * 4
            + B * H * h_last.dtype.itemsize
            + C * B * 4
        ),
    )

    partials = pl.pallas_call(
        _fused_head_kernel,
        out_shape=jax.ShapeDtypeStruct((C, B, 1), jnp.float32),
        grid_spec=pltpu.PrefetchScalarGridSpec(
            num_scalar_prefetch=0,
            grid=(C, kt),
            in_specs=[
                pl.BlockSpec((B, H), lambda c, k: (0, 0)),       # h_last (resident)
                wlm_spec,                                        # W_lm tile stream
                pl.BlockSpec((1, tv), lambda c, k: (0, c * kt + k)),  # w_head tile
            ],
            out_specs=pl.BlockSpec((None, B, 1), lambda c, k: (c, 0, 0)),
        ),
        compiler_params=pltpu.CompilerParams(
            dimension_semantics=("parallel", "arbitrary"),
            vmem_limit_bytes=vmem_limit_bytes,
        ),
        cost_estimate=cost,
    )(h_last, w_lm_padded, w_head_row)

    # Tiny epilogue on [C,B,1]: combine core partials, bias, sigmoid, squeeze.
    value = jax.nn.sigmoid(jnp.sum(partials, axis=0) + jnp.float32(b_head))
    return value[:, 0]


# ----------------------------------------------------------------------------
# Forward
# ----------------------------------------------------------------------------

def synthetic_base_model(input_ids, attention_mask, embed_table):
    """Deterministic stand-in for the Qwen backbone: last-token hidden state
    [B, H] bf16.  attention_mask accepted for API parity (the PyTorch forward
    indexes position -1 regardless of mask)."""
    del attention_mask
    return embed_table[input_ids[:, -1]]


@jax.jit
def qwen_math_rm_forward(input_ids, attention_mask, params):
    h_last = synthetic_base_model(input_ids, attention_mask, params["embed"])
    return qwen_math_rm_head_folded(h_last, params["w_fold_row"], params["b_head"])


if __name__ == "__main__":
    # Small synthetic shapes consistent with the forward: batch=2, seq=8,
    # hidden=32, vocab=256 (stand-ins for 3584 / 151936).
    B, S, H, V = 2, 8, 32, 256

    key = jax.random.PRNGKey(0)
    k_emb, k_lm, k_head, k_ids = jax.random.split(key, 4)

    embed = (jax.random.normal(k_emb, (V, H), jnp.float32) * 0.02).astype(jnp.bfloat16)
    w_lm = (jax.random.normal(k_lm, (H, V), jnp.float32) * 0.02).astype(jnp.bfloat16)
    w_head = jax.random.normal(k_head, (V,), jnp.float32) * 0.05  # Linear(V,1).weight
    b_head = jnp.float32(0.1)                                     # Linear(V,1).bias

    params = {
        "embed": embed,
        "b_head": b_head,
        # One-time offline fold of the two constant linears (f32, [1, H]).
        "w_fold_row": fold_reward_head(w_lm, w_head).reshape(1, H),
    }

    input_ids = jax.random.randint(k_ids, (B, S), 0, V, dtype=jnp.int32)
    attention_mask = jnp.ones((B, S), dtype=jnp.int32)

    # Primary (folded) path.
    out = qwen_math_rm_forward(input_ids, attention_mask, params)
    out = jax.block_until_ready(out)

    # Fallback (fused streaming) path, exercised at the same small shapes for
    # both the single-core layout and the 2-TensorCore (v7x) vocab split.
    h_last = embed[input_ids[:, -1]]
    tv, wlm_buffers, vmem_limit = pick_fused_config(H, V, w_lm.dtype.itemsize)
    outs_fused = []
    for splits in (1, 2):
        w_lm_p, w_head_row = prepare_fused_head_weights(
            w_lm, w_head, tv=tv, num_core_splits=splits)   # one-time, offline
        fused_fn = jax.jit(functools.partial(
            qwen_math_rm_head_fused, tv=tv, num_core_splits=splits,
            wlm_buffers=wlm_buffers, vmem_limit_bytes=vmem_limit))
        outs_fused.append(jax.block_until_ready(
            fused_fn(h_last, w_lm_p, w_head_row, b_head)))

    # Pure-JAX f32 reference (logits materialized, then head + sigmoid).
    logits_ref = jnp.dot(h_last, w_lm, preferred_element_type=jnp.float32)
    ref = jax.nn.sigmoid(logits_ref @ w_head + b_head)

    assert out.shape == (B,)
    # Folded path changes summation order vs. the reference -> tiny ULP diffs.
    assert jnp.allclose(out, ref, atol=1e-4, rtol=1e-4)
    for out_fused in outs_fused:
        assert out_fused.shape == (B,)
        assert jnp.allclose(out_fused, ref, atol=1e-4, rtol=1e-4)

    print("KERNEL_OK")
</pallas_src>

<mosaic_0001>
module attributes {stable_mosaic.version = 11 : i64} {
  func.func @_folded_head_kernel(%arg0: i32, %arg1: memref<1xf32, #tpu.memory_space<smem>>, %arg2: memref<2x32xbf16, #tpu.memory_space<vmem>>, %arg3: memref<1x32xf32, #tpu.memory_space<vmem>>, %arg4: memref<2x1xf32, #tpu.memory_space<vmem>>) attributes {dimension_semantics = [#tpu.dimension_semantics<arbitrary>], iteration_bounds = array<i64: 1>, scalar_prefetch = 0 : i64, scratch_operands = 0 : i64, tpu.core_type = #tpu.core_type<tc>, window_params = [{transform_indices = @transform_0, window_bounds = array<i64: 1>}, {pipeline_mode = #tpu.pipeline_mode<synchronous>, transform_indices = @transform_1, window_bounds = array<i64: 2, 32>}, {pipeline_mode = #tpu.pipeline_mode<synchronous>, transform_indices = @transform_2, window_bounds = array<i64: 1, 32>}, {pipeline_mode = #tpu.pipeline_mode<synchronous>, transform_indices = @transform_3, window_bounds = array<i64: 2, 1>}]} {
    %c0 = arith.constant 0 : index
    %c0_0 = arith.constant 0 : index
    %0 = vector.load %arg2[%c0, %c0_0] : memref<2x32xbf16, #tpu.memory_space<vmem>>, vector<2x32xbf16>
    %1 = arith.extf %0 : vector<2x32xbf16> to vector<2x32xf32>
    %c0_1 = arith.constant 0 : index
    %c0_2 = arith.constant 0 : index
    %2 = vector.load %arg3[%c0_1, %c0_2] : memref<1x32xf32, #tpu.memory_space<vmem>>, vector<1x32xf32>
    %3 = vector.broadcast %2 : vector<1x32xf32> to vector<2x32xf32>
    %4 = arith.mulf %1, %3 : vector<2x32xf32>
    %cst = arith.constant dense<0.000000e+00> : vector<2xf32>
    %5 = vector.multi_reduction <add>, %4, %cst [1] : vector<2x32xf32> to vector<2xf32>
    %6 = vector.shape_cast %5 : vector<2xf32> to vector<2x1xf32>
    %c0_3 = arith.constant 0 : index
    %7 = memref.load %arg1[%c0_3] : memref<1xf32, #tpu.memory_space<smem>>
    %8 = vector.broadcast %7 : f32 to vector<2x1xf32>
    %9 = arith.addf %6, %8 : vector<2x1xf32>
    %10 = arith.negf %9 : vector<2x1xf32>
    %11 = math.exp %10 : vector<2x1xf32>
    %cst_4 = arith.constant 1.000000e+00 : f32
    %12 = vector.broadcast %cst_4 : f32 to vector<2x1xf32>
    %13 = arith.addf %12, %11 : vector<2x1xf32>
    %14 = arith.divf %12, %13 : vector<2x1xf32>
    %c0_5 = arith.constant 0 : index
    %c0_6 = arith.constant 0 : index
    %15 = vector.load %arg4[%c0_5, %c0_6] : memref<2x1xf32, #tpu.memory_space<vmem>>, vector<2x1xf32>
    tpu.vector_store %arg4[%c0_5, %c0_6], %14 {strides = array<i32>} : memref<2x1xf32, #tpu.memory_space<vmem>>, vector<2x1xf32>,
    return
  }
  func.func @transform_0(%arg0: i32) -> i32 {
    %c0_i32 = arith.constant 0 : i32
    %c0_i32_0 = arith.constant 0 : i32
    return %c0_i32 : i32
  }
  func.func @transform_1(%arg0: i32) -> (i32, i32) {
    %c0_i32 = arith.constant 0 : i32
    %c0_i32_0 = arith.constant 0 : i32
    %c0_i32_1 = arith.constant 0 : i32
    return %c0_i32, %c0_i32_0 : i32, i32
  }
  func.func @transform_2(%arg0: i32) -> (i32, i32) {
    %c0_i32 = arith.constant 0 : i32
    %c0_i32_0 = arith.constant 0 : i32
    %c0_i32_1 = arith.constant 0 : i32
    return %c0_i32, %c0_i32_0 : i32, i32
  }
  func.func @transform_3(%arg0: i32) -> (i32, i32) {
    %c0_i32 = arith.constant 0 : i32
    %c0_i32_0 = arith.constant 0 : i32
    %c0_i32_1 = arith.constant 0 : i32
    return %c0_i32, %c0_i32_0 : i32, i32
  }
}

</mosaic_0001>

<llo_original>
// kernel: qwen_math_rm_forward.1
$region0: #{qwen_math_rm_forward.1}
  #allocation0 [shape = 'u32[]', space=smem, size = 0x4, offset = 0x4, fixed_abs, tag = 'smem constant byte address 0x4 - core index']
  #allocation1 [shape = 'u32[144,128]{1,0:T(1,128)}', space=vmem, size = 0x12000, scoped, tag = 'internal scratch']
  #allocation2 [shape = 'f32[1]{0:T(128)S(6)}', space=smem, size = 0x200, scoped, tag = 'scoped memory for qwen_math_rm_forward.1']
  %s0 = inlined_call_operand.<no memory space> [shape: f32[1], index: 0, kind: input, shape index: {}]
  %s1 = inlined_call_operand.vmem [shape: bf16[2,32], index: 1, kind: input, shape index: {}]
  %s2 = inlined_call_operand.vmem [shape: f32[1,32], index: 2, kind: input, shape index: {}]
  %s3 = inlined_call_operand.vmem [shape: f32[2,1], index: 3, kind: output, shape index: {}]
  %s4 = sld [smem:[#allocation0]]
  $region22: #{qwen_math_rm_forward.1} parent=0
    _
  %s6 = ssub.s32 1, %s4
  %s7 = scalar_select 0, %s6, %s4
  %8 = sst [smem:[#allocation2]] %s0
  // Predicated region
  $region2: #{qwen_math_rm_forward.1} parent=0 // pred_check
    _
  $region3: #{qwen_math_rm_forward.1} parent=0 // pred_check_branch
    %10 = sbr.rel (0) target = $region5
  $region4: #{qwen_math_rm_forward.1} parent=0 // pred_region
    _
  $region5: #{qwen_math_rm_forward.1} parent=0 // pred_fallthru
    _
  // Predicated region
  $region6: #{qwen_math_rm_forward.1} parent=0 // pred_check
    _
  $region7: #{qwen_math_rm_forward.1} parent=0 // pred_check_branch
    %12 = sbr.rel (0) target = $region9
  $region8: #{qwen_math_rm_forward.1} parent=0 // pred_region
    _
  $region9: #{qwen_math_rm_forward.1} parent=0 // pred_fallthru
    _
  // Predicated region
  $region10: #{qwen_math_rm_forward.1} parent=0 // pred_check
    _
  $region11: #{qwen_math_rm_forward.1} parent=0 // pred_check_branch
    %14 = sbr.rel (0) target = $region13
  $region12: #{qwen_math_rm_forward.1} parent=0 // pred_region
    _
  $region13: #{qwen_math_rm_forward.1} parent=0 // pred_fallthru
    _
  %v15 = vld [vmem:[%s1] sm:$0x1]
  %v16 = vunpack.c.l.bf16 %v15
  %v17 = vld [vmem:[%s2] sm:$0x1]
  %v19 = vlaneseq
  %v20 = vshrl.u32 %v19, 7
  %v21 = vsub.s32 0, %v20
  %v22 = vrot.slane %v17, %v21
  %v24 = vmul.f32 %v16, %v22
  %vm25 = vcmask 254976
  %v26 = vsel %vm25, %v24, 0.0
  %27 = vadd.xlane.f32.xlu0 %v26
  %v28 = vpop.xlane.xlu0 %27
  %s29 = sld [smem:[#allocation2]]
  %v30 = vstv %s29
  %v31 = vadd.f32 %v28, %v30
  %v32 = vxor.u32 %v31, 2147483648
  %v33 = vmul.f32 %v32, 1.442695
  %v34 = vpow.pop %v33
  %v35 = vadd.f32 %v34, 1.0
  %v36 = vrcp.pop %v35
  %v37 = vmul.f32 1.0, %v36
  %vm38 = vcmask 1024
  %39 = vst.msk [vmem:[%s3] sm:$0x3] %vm38, %v37
  // Predicated region
  $region14: #{qwen_math_rm_forward.1} parent=0 // pred_check
    _
  $region15: #{qwen_math_rm_forward.1} parent=0 // pred_check_branch
    %41 = sbr.rel (0) target = $region17
  $region16: #{qwen_math_rm_forward.1} parent=0 // pred_region
    _
  $region17: #{qwen_math_rm_forward.1} parent=0 // pred_fallthru
    _
  // Predicated region
  $region18: #{qwen_math_rm_forward.1} parent=0 // pred_check
    _
  $region19: #{qwen_math_rm_forward.1} parent=0 // pred_check_branch
    %43 = sbr.rel (0) target = $region21
  $region20: #{qwen_math_rm_forward.1} parent=0 // pred_region
    _
  $region21: #{qwen_math_rm_forward.1} parent=0 // pred_fallthru
    _

</llo_original>
